<compile_context>
chip_gen: v5e
topology: v5e:2x2
jax: 0.10.0
libtpu: 0.0.40
codegen_flags: <defaults>
</compile_context>

<pallas_src>
import functools
import math

import jax
import jax.numpy as jnp
from jax.experimental import pallas as pl
from jax.experimental.pallas import tpu as pltpu

EPS = 1e-5
EXPANSION = 4


def _vmem_budget_bytes():
    """Generation-aware VMEM budget: ~75% of physical VMEM, capped at 100 MiB."""
    cap = 64 * 1024 * 1024
    try:
        cap = int(pltpu.get_tpu_info().vmem_capacity_bytes)
    except Exception:
        pass
    return min((cap * 3) // 4, 100 * 1024 * 1024)


_VMEM_BUDGET = _vmem_budget_bytes()


def _compiler_params():
    return pltpu.CompilerParams(
        dimension_semantics=("parallel",),
        vmem_limit_bytes=_VMEM_BUDGET,
    )


def _row_mask(tile_rows, total_rows):
    """(tile_rows, 1) bool mask marking rows inside the real (unpadded) array."""
    i = pl.program_id(0)
    row = jax.lax.broadcasted_iota(jnp.int32, (tile_rows, 1), 0) + i * tile_rows
    return row < total_rows


def _partial_stats(st_ref, y_f32, mask=None):
    """Per-tile per-channel partial (sum, sum_sq) from the f32 accumulator."""
    v = y_f32 if mask is None else jnp.where(mask, y_f32, 0.0)
    c = v.shape[-1]
    st_ref[:, 0:1, :] = jnp.sum(v, axis=0, keepdims=True).reshape(1, 1, c)
    st_ref[:, 1:2, :] = jnp.sum(v * v, axis=0, keepdims=True).reshape(1, 1, c)


def _finalize_bn(stats, m, gamma, beta):
    """Fold batch statistics + (gamma, beta) into one scale/shift (plain-JAX
    glue over per-channel vectors only)."""
    tot = jnp.sum(stats.astype(jnp.float32), axis=0)          # (2, C)
    mean = tot[0] / m
    var = jnp.maximum(tot[1] / m - mean * mean, 0.0)           # biased variance
    scale = gamma.reshape(-1) * jax.lax.rsqrt(var + EPS)
    shift = beta.reshape(-1) - mean * scale
    return scale.reshape(1, -1), shift.reshape(1, -1)


def _pick_tile_rows(m, bytes_per_row, fixed_bytes, requested=None, cap=1024):
    if requested is None:
        avail = max(_VMEM_BUDGET // 2 - fixed_bytes, 1 << 20)
        tm = max(8, min(cap, (avail // max(bytes_per_row, 1) // 8) * 8))
    else:
        tm = requested
    if m <= tm:
        return m                      # full-extent block (any row count)
    assert tm % 8 == 0, "row tile must be a multiple of 8"
    return tm


# ---------------------------------------------------------------------------
# Stage 1: 1x1 conv (+ fused projection shortcut when stride==1) + BN stats
# ---------------------------------------------------------------------------
def _stage1_kernel(tm, m_total, fuse_shortcut, x_ref, w1_ref, *refs):
    if fuse_shortcut:
        ws_ref, y1_ref, st1_ref, ysc_ref, sts_ref = refs
    else:
        y1_ref, st1_ref = refs
    mask = _row_mask(tm, m_total)
    x = x_ref[...]
    y1 = jnp.dot(x, w1_ref[...], preferred_element_type=jnp.float32)
    y1_ref[...] = y1.astype(y1_ref.dtype)
    _partial_stats(st1_ref, y1, mask)
    if fuse_shortcut:
        # x is already resident in VMEM: shortcut conv costs zero extra HBM reads.
        ysc = jnp.dot(x, ws_ref[...], preferred_element_type=jnp.float32)
        ysc_ref[...] = ysc.astype(ysc_ref.dtype)
        _partial_stats(sts_ref, ysc, mask)


def _stage1(x2d, w1, ws, tile_rows, cdtype, fuse_shortcut):
    m, cin = x2d.shape
    cmid = w1.shape[1]
    cout = ws.shape[1] if fuse_shortcut else 0
    itemsize = jnp.dtype(cdtype).itemsize
    fixed = 2 * w1.size * itemsize + (2 * ws.size * itemsize if fuse_shortcut else 0)
    bytes_per_row = 2 * (cin + cmid + cout) * itemsize + 4 * (cmid + cout)
    tm = _pick_tile_rows(m, bytes_per_row, fixed, tile_rows)
    t = pl.cdiv(m, tm)

    in_specs = [pl.BlockSpec((tm, cin), lambda i: (i, 0)),
                pl.BlockSpec((cin, cmid), lambda i: (0, 0))]
    args = [x2d, w1]
    out_specs = [pl.BlockSpec((tm, cmid), lambda i: (i, 0)),
                 pl.BlockSpec((1, 2, cmid), lambda i: (i, 0, 0))]
    out_shape = [jax.ShapeDtypeStruct((m, cmid), cdtype),
                 jax.ShapeDtypeStruct((t, 2, cmid), jnp.float32)]
    flops = 2 * m * cin * cmid
    if fuse_shortcut:
        in_specs.append(pl.BlockSpec((cin, cout), lambda i: (0, 0)))
        args.append(ws)
        out_specs += [pl.BlockSpec((tm, cout), lambda i: (i, 0)),
                      pl.BlockSpec((1, 2, cout), lambda i: (i, 0, 0))]
        out_shape += [jax.ShapeDtypeStruct((m, cout), cdtype),
                      jax.ShapeDtypeStruct((t, 2, cout), jnp.float32)]
        flops += 2 * m * cin * cout
    bytes_accessed = (sum(a.size * a.dtype.itemsize for a in args)
                      + sum(math.prod(s.shape) * jnp.dtype(s.dtype).itemsize
                            for s in out_shape))
    return pl.pallas_call(
        functools.partial(_stage1_kernel, tm, m, fuse_shortcut),
        grid=(t,),
        in_specs=in_specs, out_specs=out_specs, out_shape=out_shape,
        compiler_params=_compiler_params(),
        cost_estimate=pl.CostEstimate(flops=flops, transcendentals=0,
                                      bytes_accessed=int(bytes_accessed)),
    )(*args)


# ---------------------------------------------------------------------------
# Stage 2: BN1+ReLU -> 3x3 conv (stride, pad=1), batch-blocked, no im2col
#          (+ fused projection shortcut when stride != 1)
# ---------------------------------------------------------------------------
def _stage2_kernel(b, H, W, Ho, Wo, cmid, stride, cdtype, fuse_shortcut, *refs):
    if fuse_shortcut:
        (y1_ref, sc_ref, sh_ref, w2_ref, x_ref, ws_ref,
         y2_ref, st2_ref, ysc_ref, sts_ref, pad_ref) = refs
    else:
        (y1_ref, sc_ref, sh_ref, w2_ref, y2_ref, st2_ref, pad_ref) = refs

    rows_out = b * Ho * Wo

    # Folded BN1 scale/shift + ReLU for this batch block.
    h = y1_ref[...].astype(jnp.float32)
    h = h * sc_ref[...] + sh_ref[...]
    h = jnp.maximum(h, 0.0).astype(cdtype)
    h4 = h.reshape(b, H, W, cmid)

    # Halo-padded activations: zero ONLY the 1-pixel halo (interior rewritten).
    pad_ref[:, 0:1, :, :] = jnp.zeros((b, 1, W + 2, cmid), cdtype)
    pad_ref[:, H + 1:H + 2, :, :] = jnp.zeros((b, 1, W + 2, cmid), cdtype)
    pad_ref[:, 1:H + 1, 0:1, :] = jnp.zeros((b, H, 1, cmid), cdtype)
    pad_ref[:, 1:H + 1, W + 1:W + 2, :] = jnp.zeros((b, H, 1, cmid), cdtype)
    pad_ref[:, 1:H + 1, 1:W + 1, :] = h4

    # 3x3 conv = nine accumulated K=cmid matmuls into an f32 accumulator.
    hlen = (Ho - 1) * stride + 1
    wlen = (Wo - 1) * stride + 1
    acc = jnp.zeros((rows_out, cmid), jnp.float32)
    for t in range(9):
        di, dj = t // 3, t % 3
        patch = pad_ref[:, di:di + hlen, dj:dj + wlen, :]
        if stride != 1:
            # TODO(synk): parity-split pad buffer would make this unit-stride.
            patch = jax.lax.slice(patch, (0, 0, 0, 0), (b, hlen, wlen, cmid),
                                  (1, stride, stride, 1))
        acc = acc + jnp.dot(patch.reshape(rows_out, cmid),
                            w2_ref[t * cmid:(t + 1) * cmid, :],
                            preferred_element_type=jnp.float32)
    y2_ref[...] = acc.astype(y2_ref.dtype)
    _partial_stats(st2_ref, acc)

    if fuse_shortcut:
        cin = x_ref.shape[-1]
        x4 = x_ref[...].reshape(b, H, W, cin)
        xs = jax.lax.slice(x4, (0, 0, 0, 0), (b, hlen, wlen, cin),
                           (1, stride, stride, 1))
        ysc = jnp.dot(xs.reshape(rows_out, cin), ws_ref[...],
                      preferred_element_type=jnp.float32)
        ysc_ref[...] = ysc.astype(ysc_ref.dtype)
        _partial_stats(sts_ref, ysc)


def _pick_batch_block(N, H, W, Ho, Wo, cmid, cin_sc, cout_sc, cdtype):
    """Largest divisor b of N whose stage-2 block fits the VMEM budget; stop
    once b*Ho*Wo reaches ~2048 rows (plenty for the MXU M dimension)."""
    itemsize = jnp.dtype(cdtype).itemsize
    budget = int(_VMEM_BUDGET * 0.6)

    def est(b):
        rows_in, rows_out = b * H * W, b * Ho * Wo
        e = 2 * rows_in * cmid * itemsize + 2 * rows_out * cmid * itemsize
        e += 2 * 9 * cmid * cmid * itemsize
        e += b * (H + 2) * (W + 2) * cmid * itemsize
        e += rows_in * cmid * 4 + rows_out * cmid * 4
        if cin_sc:
            e += 2 * rows_in * cin_sc * itemsize + 2 * rows_out * cout_sc * itemsize
            e += 2 * cin_sc * cout_sc * itemsize + rows_out * cout_sc * 4
        return e

    best = None
    for b in range(1, N + 1):
        if N % b:
            continue
        rows_in, rows_out = b * H * W, b * Ho * Wo
        aligned = (b == N) or (rows_in % 8 == 0 and rows_out % 8 == 0)
        if not aligned or est(b) > budget:
            continue
        best = b
        if rows_out >= 2048:
            break
    if best is None:
        # TODO(synk): row-chunk within a sample if one sample exceeds the budget.
        best = 1 if ((H * W) % 8 == 0 and (Ho * Wo) % 8 == 0) or N == 1 else N
    return best


def _stage2(y1, sc1, sh1, w2col, x2d, ws, N, H, W, stride, cdtype):
    Ho = (H - 1) // stride + 1
    Wo = (W - 1) // stride + 1
    cmid = w2col.shape[1]
    fuse_shortcut = x2d is not None
    cin = x2d.shape[1] if fuse_shortcut else 0
    cout = ws.shape[1] if fuse_shortcut else 0
    b = _pick_batch_block(N, H, W, Ho, Wo, cmid, cin, cout, cdtype)
    t = N // b
    M2 = N * Ho * Wo
    rows_in = b * H * W
    rows_out = b * Ho * Wo
    itemsize = jnp.dtype(cdtype).itemsize

    in_specs = [
        pl.BlockSpec((rows_in, cmid), lambda i: (i, 0)),
        pl.BlockSpec((1, cmid), lambda i: (0, 0)),
        pl.BlockSpec((1, cmid), lambda i: (0, 0)),
        pl.BlockSpec((9 * cmid, cmid), lambda i: (0, 0)),
    ]
    args = [y1, sc1, sh1, w2col]
    out_specs = [
        pl.BlockSpec((rows_out, cmid), lambda i: (i, 0)),
        pl.BlockSpec((1, 2, cmid), lambda i: (i, 0, 0)),
    ]
    out_shape = [
        jax.ShapeDtypeStruct((M2, cmid), cdtype),
        jax.ShapeDtypeStruct((t, 2, cmid), jnp.float32),
    ]
    flops = 2 * M2 * 9 * cmid * cmid
    bytes_accessed = (N * H * W * cmid + 9 * cmid * cmid + M2 * cmid) * itemsize
    if fuse_shortcut:
        in_specs += [pl.BlockSpec((rows_in, cin), lambda i: (i, 0)),
                     pl.BlockSpec((cin, cout), lambda i: (0, 0))]
        args += [x2d, ws]
        out_specs += [pl.BlockSpec((rows_out, cout), lambda i: (i, 0)),
                      pl.BlockSpec((1, 2, cout), lambda i: (i, 0, 0))]
        out_shape += [jax.ShapeDtypeStruct((M2, cout), cdtype),
                      jax.ShapeDtypeStruct((t, 2, cout), jnp.float32)]
        flops += 2 * M2 * cin * cout
        bytes_accessed += (N * H * W * cin + cin * cout + M2 * cout) * itemsize

    return pl.pallas_call(
        functools.partial(_stage2_kernel, b, H, W, Ho, Wo, cmid, stride,
                          cdtype, fuse_shortcut),
        grid=(t,),
        in_specs=in_specs, out_specs=out_specs, out_shape=out_shape,
        scratch_shapes=[pltpu.VMEM((b, H + 2, W + 2, cmid), cdtype)],
        compiler_params=_compiler_params(),
        cost_estimate=pl.CostEstimate(flops=flops, transcendentals=0,
                                      bytes_accessed=int(bytes_accessed)),
    )(*args)


# ---------------------------------------------------------------------------
# Stage 3: BN2+ReLU -> 1x1 expansion conv + BN3 partial statistics
# ---------------------------------------------------------------------------
def _stage3_kernel(tm, m_total, y2_ref, sc_ref, sh_ref, w3_ref, y3_ref, st3_ref):
    mask = _row_mask(tm, m_total)
    h = y2_ref[...].astype(jnp.float32) * sc_ref[...] + sh_ref[...]
    h = jnp.maximum(h, 0.0).astype(w3_ref.dtype)
    y3 = jnp.dot(h, w3_ref[...], preferred_element_type=jnp.float32)
    y3_ref[...] = y3.astype(y3_ref.dtype)
    _partial_stats(st3_ref, y3, mask)


def _stage3(y2, sc2, sh2, w3, tile_rows, cdtype):
    m, cmid = y2.shape
    cout = w3.shape[1]
    itemsize = jnp.dtype(cdtype).itemsize
    fixed = 2 * w3.size * itemsize
    bytes_per_row = 2 * (cmid + cout) * itemsize + 4 * (cmid + cout)
    tm = _pick_tile_rows(m, bytes_per_row, fixed, tile_rows)
    t = pl.cdiv(m, tm)
    bytes_accessed = (y2.size + w3.size + m * cout) * itemsize
    return pl.pallas_call(
        functools.partial(_stage3_kernel, tm, m),
        grid=(t,),
        in_specs=[pl.BlockSpec((tm, cmid), lambda i: (i, 0)),
                  pl.BlockSpec((1, cmid), lambda i: (0, 0)),
                  pl.BlockSpec((1, cmid), lambda i: (0, 0)),
                  pl.BlockSpec((cmid, cout), lambda i: (0, 0))],
        out_specs=[pl.BlockSpec((tm, cout), lambda i: (i, 0)),
                   pl.BlockSpec((1, 2, cout), lambda i: (i, 0, 0))],
        out_shape=[jax.ShapeDtypeStruct((m, cout), cdtype),
                   jax.ShapeDtypeStruct((t, 2, cout), jnp.float32)],
        compiler_params=_compiler_params(),
        cost_estimate=pl.CostEstimate(flops=2 * m * cmid * cout,
                                      transcendentals=0,
                                      bytes_accessed=int(bytes_accessed)),
    )(y2, sc2, sh2, w3)


# ---------------------------------------------------------------------------
# Stage 4: BN3 (+ shortcut BN or identity) + add + ReLU
# ---------------------------------------------------------------------------
def _stage4_kernel(has_shortcut, y3_ref, sc3_ref, sh3_ref, *refs):
    if has_shortcut:
        ysc_ref, scs_ref, shs_ref, o_ref = refs
    else:
        xid_ref, o_ref = refs
    r = y3_ref[...].astype(jnp.float32) * sc3_ref[...] + sh3_ref[...]
    if has_shortcut:
        s = ysc_ref[...].astype(jnp.float32) * scs_ref[...] + shs_ref[...]
    else:
        s = xid_ref[...].astype(jnp.float32)
    o_ref[...] = jnp.maximum(r + s, 0.0).astype(o_ref.dtype)


def _stage4(y3, sc3, sh3, branch, scs, shs, tile_rows, cdtype, has_shortcut):
    m, cout = y3.shape
    itemsize = jnp.dtype(cdtype).itemsize
    bytes_per_row = 2 * 3 * cout * itemsize + 8 * cout
    tm = _pick_tile_rows(m, bytes_per_row, 0, tile_rows)
    t = pl.cdiv(m, tm)
    in_specs = [pl.BlockSpec((tm, cout), lambda i: (i, 0)),
                pl.BlockSpec((1, cout), lambda i: (0, 0)),
                pl.BlockSpec((1, cout), lambda i: (0, 0))]
    args = [y3, sc3, sh3]
    if has_shortcut:
        in_specs += [pl.BlockSpec((tm, cout), lambda i: (i, 0)),
                     pl.BlockSpec((1, cout), lambda i: (0, 0)),
                     pl.BlockSpec((1, cout), lambda i: (0, 0))]
        args += [branch, scs, shs]
    else:
        in_specs += [pl.BlockSpec((tm, cout), lambda i: (i, 0))]
        args += [branch]
    bytes_accessed = sum(a.size * a.dtype.itemsize for a in args) + m * cout * itemsize
    return pl.pallas_call(
        functools.partial(_stage4_kernel, has_shortcut),
        grid=(t,),
        in_specs=in_specs,
        out_specs=pl.BlockSpec((tm, cout), lambda i: (i, 0)),
        out_shape=jax.ShapeDtypeStruct((m, cout), cdtype),
        compiler_params=_compiler_params(),
        cost_estimate=pl.CostEstimate(flops=6 * m * cout, transcendentals=0,
                                      bytes_accessed=int(bytes_accessed)),
    )(*args)


# ---------------------------------------------------------------------------
# Full BottleNeck forward
# ---------------------------------------------------------------------------
def bottleneck_forward_nhwc(x_nhwc, params, in_channels, out_channels, stride,
                            compute_dtype=jnp.float32, tile_rows=None):
    N, H, W, Cin = x_nhwc.shape
    assert Cin == in_channels
    Cmid = out_channels
    Cout = out_channels * EXPANSION
    has_shortcut = (stride != 1) or (Cin != Cout)
    Ho = (H - 1) // stride + 1
    Wo = (W - 1) // stride + 1
    M1 = N * H * W
    M2 = N * Ho * Wo
    cdtype = jnp.dtype(compute_dtype)

    x2d = x_nhwc.astype(cdtype).reshape(M1, Cin)

    # Weights in the matmul compute dtype (bf16 halves DMA bytes, ~2x MXU
    # throughput on v6e/v7x; accumulation stays f32).
    w1 = params['w1'].astype(cdtype)                      # (Cin, Cmid)
    w2col = params['w2'].reshape(9 * Cmid, Cmid).astype(cdtype)
    w3 = params['w3'].astype(cdtype)                      # (Cmid, Cout)
    ws = params['ws'].astype(cdtype) if has_shortcut else None

    shortcut_in_stage1 = has_shortcut and stride == 1
    shortcut_in_stage2 = has_shortcut and stride != 1

    # ---- stage 1: 1x1 conv (+ fused shortcut if stride==1) + BN1 stats -----
    if shortcut_in_stage1:
        y1, st1, ysc, sts = _stage1(x2d, w1, ws, tile_rows, cdtype, True)
    else:
        y1, st1 = _stage1(x2d, w1, None, tile_rows, cdtype, False)
        ysc = sts = None
    sc1, sh1 = _finalize_bn(st1, M1, params['g1'], params['b1'])

    # ---- stage 2: BN1+ReLU -> 3x3 conv (batch-blocked, no im2col) ----------
    if shortcut_in_stage2:
        y2, st2, ysc, sts = _stage2(y1, sc1, sh1, w2col, x2d, ws,
                                    N, H, W, stride, cdtype)
    else:
        y2, st2 = _stage2(y1, sc1, sh1, w2col, None, None,
                          N, H, W, stride, cdtype)
    sc2, sh2 = _finalize_bn(st2, M2, params['g2'], params['b2'])

    # ---- stage 3: BN2+ReLU -> expansion 1x1 conv + BN3 stats ---------------
    y3, st3 = _stage3(y2, sc2, sh2, w3, tile_rows, cdtype)
    sc3, sh3 = _finalize_bn(st3, M2, params['g3'], params['b3'])

    # ---- stage 4: BN3 (+ shortcut BN or identity) + add + ReLU -------------
    if has_shortcut:
        scs, shs = _finalize_bn(sts, M2, params['gs'], params['bs'])
        out2d = _stage4(y3, sc3, sh3, ysc, scs, shs, tile_rows, cdtype, True)
    else:
        out2d = _stage4(y3, sc3, sh3, x2d, None, None, tile_rows, cdtype, False)

    return out2d.reshape(N, Ho, Wo, Cout)


def bottleneck_forward(x_nchw, params, in_channels, out_channels, stride,
                       compute_dtype=jnp.float32, tile_rows=None):
    # NCHW interface matching the PyTorch module. In a full network keep NHWC
    # end-to-end and call bottleneck_forward_nhwc directly (each transpose
    # below is a full HBM read+write pass done by XLA outside the kernels).
    x_nhwc = jnp.transpose(x_nchw, (0, 2, 3, 1))
    out = bottleneck_forward_nhwc(x_nhwc, params, in_channels, out_channels,
                                  stride, compute_dtype, tile_rows)
    return jnp.transpose(out, (0, 3, 1, 2))


# ---------------------------------------------------------------------------
# Pure-JAX reference (lax.conv, f32) for correctness checking
# ---------------------------------------------------------------------------
def reference_forward(x_nhwc, p, stride, has_shortcut):
    dn = ('NHWC', 'HWIO', 'NHWC')

    def bn(y, g, b):
        mean = jnp.mean(y, axis=(0, 1, 2), keepdims=True)
        var = jnp.mean((y - mean) ** 2, axis=(0, 1, 2), keepdims=True)
        return (y - mean) * jax.lax.rsqrt(var + EPS) * g + b

    h = jax.lax.conv_general_dilated(x_nhwc, p['w1'][None, None], (1, 1),
                                     'VALID', dimension_numbers=dn)
    h = jax.nn.relu(bn(h, p['g1'], p['b1']))
    h = jax.lax.conv_general_dilated(h, p['w2'], (stride, stride),
                                     ((1, 1), (1, 1)), dimension_numbers=dn)
    h = jax.nn.relu(bn(h, p['g2'], p['b2']))
    h = jax.lax.conv_general_dilated(h, p['w3'][None, None], (1, 1), 'VALID',
                                     dimension_numbers=dn)
    h = bn(h, p['g3'], p['b3'])
    if has_shortcut:
        s = jax.lax.conv_general_dilated(x_nhwc, p['ws'][None, None],
                                         (stride, stride), 'VALID',
                                         dimension_numbers=dn)
        s = bn(s, p['gs'], p['bs'])
    else:
        s = x_nhwc
    return jax.nn.relu(h + s)


def _make_params(key, cin, cmid, cout, has_shortcut):
    keys = jax.random.split(key, 12)

    def nrm(k, shape, scale=0.1):
        return scale * jax.random.normal(k, shape, jnp.float32)

    p = {
        'w1': nrm(keys[0], (cin, cmid)),
        'g1': 1.0 + nrm(keys[1], (1, cmid)), 'b1': nrm(keys[2], (1, cmid)),
        'w2': nrm(keys[3], (3, 3, cmid, cmid)),
        'g2': 1.0 + nrm(keys[4], (1, cmid)), 'b2': nrm(keys[5], (1, cmid)),
        'w3': nrm(keys[6], (cmid, cout)),
        'g3': 1.0 + nrm(keys[7], (1, cout)), 'b3': nrm(keys[8], (1, cout)),
    }
    if has_shortcut:
        p.update({
            'ws': nrm(keys[9], (cin, cout)),
            'gs': 1.0 + nrm(keys[10], (1, cout)), 'bs': nrm(keys[11], (1, cout)),
        })
    return p


def _run_case(name, N, H, W, cin, cmid, stride, compute_dtype, tile_rows, tol):
    cout = cmid * EXPANSION
    has_shortcut = (stride != 1) or (cin != cout)
    kx, kp = jax.random.split(jax.random.PRNGKey(0))
    params = _make_params(kp, cin, cmid, cout, has_shortcut)
    x = jax.random.normal(kx, (N, cin, H, W), jnp.float32)

    out = bottleneck_forward(x, params, cin, cmid, stride,
                             compute_dtype=compute_dtype, tile_rows=tile_rows)
    out = jax.block_until_ready(out)

    Ho = (H - 1) // stride + 1
    Wo = (W - 1) // stride + 1
    assert out.shape == (N, cout, Ho, Wo), (name, out.shape)

    x_nhwc = jnp.transpose(x, (0, 2, 3, 1))
    ref = jnp.transpose(reference_forward(x_nhwc, params, stride, has_shortcut),
                        (0, 3, 1, 2))
    err = float(jnp.max(jnp.abs(out.astype(jnp.float32) - ref)))
    scale = float(jnp.max(jnp.abs(ref))) + 1e-6
    assert err / scale < tol, f"{name}: err={err} scale={scale} tol={tol}"


if __name__ == "__main__":
    # Projection shortcut (Cin != Cout*4), stride 1, f32 compute; tile_rows=48
    # exercises the ragged last tile / row-masked statistics path.
    _run_case("proj_s1_f32", N=2, H=8, W=8, cin=16, cmid=8, stride=1,
              compute_dtype=jnp.float32, tile_rows=48, tol=1e-3)
    # Same block on the v6e/v7x fast path: bf16 matmul operands, f32 accumulate,
    # bf16 residual add/output.
    _run_case("proj_s1_bf16", N=2, H=8, W=8, cin=16, cmid=8, stride=1,
              compute_dtype=jnp.bfloat16, tile_rows=64, tol=5e-2)
    # Identity shortcut (Cin == Cout*4), stride 1.
    _run_case("id_s1_f32", N=2, H=8, W=8, cin=32, cmid=8, stride=1,
              compute_dtype=jnp.float32, tile_rows=64, tol=1e-3)
    # Stride-2 projection shortcut (shortcut conv fused into batch-blocked stage 2).
    _run_case("proj_s2_f32", N=2, H=8, W=8, cin=16, cmid=8, stride=2,
              compute_dtype=jnp.float32, tile_rows=64, tol=1e-3)
    # Auto tile selection path (tile_rows=None -> VMEM-budget-derived tiles).
    _run_case("proj_s1_auto", N=2, H=8, W=8, cin=16, cmid=8, stride=1,
              compute_dtype=jnp.float32, tile_rows=None, tol=1e-3)

    print("KERNEL_OK")
</pallas_src>

<mosaic_0001>
module attributes {stable_mosaic.version = 11 : i64} {
  func.func @_stage1_kernel(%arg0: i32, %arg1: memref<48x16xf32, #tpu.memory_space<vmem>>, %arg2: memref<16x8xf32, #tpu.memory_space<vmem>>, %arg3: memref<16x32xf32, #tpu.memory_space<vmem>>, %arg4: memref<48x8xf32, #tpu.memory_space<vmem>>, %arg5: memref<1x2x8xf32, #tpu.memory_space<vmem>>, %arg6: memref<48x32xf32, #tpu.memory_space<vmem>>, %arg7: memref<1x2x32xf32, #tpu.memory_space<vmem>>) attributes {dimension_semantics = [#tpu.dimension_semantics<parallel>], iteration_bounds = array<i64: 3>, scalar_prefetch = 0 : i64, scratch_operands = 0 : i64, tpu.core_type = #tpu.core_type<tc>, window_params = [{transform_indices = @transform_0, window_bounds = array<i64: 48, 16>}, {pipeline_mode = #tpu.pipeline_mode<synchronous>, transform_indices = @transform_1, window_bounds = array<i64: 16, 8>}, {pipeline_mode = #tpu.pipeline_mode<synchronous>, transform_indices = @transform_2, window_bounds = array<i64: 16, 32>}, {transform_indices = @transform_3, window_bounds = array<i64: 48, 8>}, {transform_indices = @transform_4, window_bounds = array<i64: 1, 2, 8>}, {transform_indices = @transform_5, window_bounds = array<i64: 48, 32>}, {transform_indices = @transform_6, window_bounds = array<i64: 1, 2, 32>}]} {
    %0 = tpu.iota {dimensions = array<i32: 0>} : vector<48x1xi32>
    %c48_i32 = arith.constant 48 : i32
    %1 = arith.muli %arg0, %c48_i32 : i32
    %2 = vector.broadcast %1 : i32 to vector<48x1xi32>
    %3 = arith.addi %0, %2 : vector<48x1xi32>
    %c128_i32 = arith.constant 128 : i32
    %4 = vector.broadcast %c128_i32 : i32 to vector<48x1xi32>
    %5 = arith.cmpi slt, %3, %4 : vector<48x1xi32>
    %c0 = arith.constant 0 : index
    %c0_0 = arith.constant 0 : index
    %6 = vector.load %arg1[%c0, %c0_0] : memref<48x16xf32, #tpu.memory_space<vmem>>, vector<48x16xf32>
    %c0_1 = arith.constant 0 : index
    %c0_2 = arith.constant 0 : index
    %7 = vector.load %arg2[%c0_1, %c0_2] : memref<16x8xf32, #tpu.memory_space<vmem>>, vector<16x8xf32>
    %cst = arith.constant dense<0.000000e+00> : vector<48x8xf32>
    %8 = tpu.matmul %6, %7, %cst {dimension_numbers = #tpu.dot_dimension_numbers<[1], [0], [0], [1], [0, 0, 1, 1], [], []>} : vector<48x16xf32>, vector<16x8xf32>, vector<48x8xf32> -> vector<48x8xf32>
    %c0_3 = arith.constant 0 : index
    %c0_4 = arith.constant 0 : index
    %9 = vector.load %arg4[%c0_3, %c0_4] : memref<48x8xf32, #tpu.memory_space<vmem>>, vector<48x8xf32>
    tpu.vector_store %arg4[%c0_3, %c0_4], %8 {strides = array<i32>} : memref<48x8xf32, #tpu.memory_space<vmem>>, vector<48x8xf32>,
    %cst_5 = arith.constant 0.000000e+00 : f32
    %10 = vector.shape_cast %5 : vector<48x1xi1> to vector<48x1xi1>
    %11 = vector.broadcast %10 : vector<48x1xi1> to vector<48x8xi1>
    %12 = vector.broadcast %cst_5 : f32 to vector<48x8xf32>
    %13 = arith.select %11, %8, %12 : vector<48x8xi1>, vector<48x8xf32>
    %cst_6 = arith.constant dense<0.000000e+00> : vector<8xf32>
    %14 = vector.multi_reduction <add>, %13, %cst_6 [0] : vector<48x8xf32> to vector<8xf32>
    %15 = vector.shape_cast %14 : vector<8xf32> to vector<1x8xf32>
    %16 = vector.shape_cast %15 : vector<1x8xf32> to vector<1x1x8xf32>
    %c0_7 = arith.constant 0 : index
    %c0_8 = arith.constant 0 : index
    %c0_9 = arith.constant 0 : index
    %17 = vector.load %arg5[%c0_7, %c0_8, %c0_9] : memref<1x2x8xf32, #tpu.memory_space<vmem>>, vector<1x1x8xf32>
    tpu.vector_store %arg5[%c0_7, %c0_8, %c0_9], %16 {strides = array<i32>} : memref<1x2x8xf32, #tpu.memory_space<vmem>>, vector<1x1x8xf32>,
    %18 = arith.mulf %13, %13 : vector<48x8xf32>
    %cst_10 = arith.constant dense<0.000000e+00> : vector<8xf32>
    %19 = vector.multi_reduction <add>, %18, %cst_10 [0] : vector<48x8xf32> to vector<8xf32>
    %20 = vector.shape_cast %19 : vector<8xf32> to vector<1x8xf32>
    %21 = vector.shape_cast %20 : vector<1x8xf32> to vector<1x1x8xf32>
    %c0_11 = arith.constant 0 : index
    %c1 = arith.constant 1 : index
    %c0_12 = arith.constant 0 : index
    %22 = vector.load %arg5[%c0_11, %c1, %c0_12] : memref<1x2x8xf32, #tpu.memory_space<vmem>>, vector<1x1x8xf32>
    tpu.vector_store %arg5[%c0_11, %c1, %c0_12], %21 {strides = array<i32>} : memref<1x2x8xf32, #tpu.memory_space<vmem>>, vector<1x1x8xf32>,
    %c0_13 = arith.constant 0 : index
    %c0_14 = arith.constant 0 : index
    %23 = vector.load %arg3[%c0_13, %c0_14] : memref<16x32xf32, #tpu.memory_space<vmem>>, vector<16x32xf32>
    %cst_15 = arith.constant dense<0.000000e+00> : vector<48x32xf32>
    %24 = tpu.matmul %6, %23, %cst_15 {dimension_numbers = #tpu.dot_dimension_numbers<[1], [0], [0], [1], [0, 0, 1, 1], [], []>} : vector<48x16xf32>, vector<16x32xf32>, vector<48x32xf32> -> vector<48x32xf32>
    %c0_16 = arith.constant 0 : index
    %c0_17 = arith.constant 0 : index
    %25 = vector.load %arg6[%c0_16, %c0_17] : memref<48x32xf32, #tpu.memory_space<vmem>>, vector<48x32xf32>
    tpu.vector_store %arg6[%c0_16, %c0_17], %24 {strides = array<i32>} : memref<48x32xf32, #tpu.memory_space<vmem>>, vector<48x32xf32>,
    %cst_18 = arith.constant 0.000000e+00 : f32
    %26 = vector.shape_cast %5 : vector<48x1xi1> to vector<48x1xi1>
    %27 = vector.broadcast %26 : vector<48x1xi1> to vector<48x32xi1>
    %28 = vector.broadcast %cst_18 : f32 to vector<48x32xf32>
    %29 = arith.select %27, %24, %28 : vector<48x32xi1>, vector<48x32xf32>
    %cst_19 = arith.constant dense<0.000000e+00> : vector<32xf32>
    %30 = vector.multi_reduction <add>, %29, %cst_19 [0] : vector<48x32xf32> to vector<32xf32>
    %31 = vector.shape_cast %30 : vector<32xf32> to vector<1x32xf32>
    %32 = vector.shape_cast %31 : vector<1x32xf32> to vector<1x1x32xf32>
    %c0_20 = arith.constant 0 : index
    %c0_21 = arith.constant 0 : index
    %c0_22 = arith.constant 0 : index
    %33 = vector.load %arg7[%c0_20, %c0_21, %c0_22] : memref<1x2x32xf32, #tpu.memory_space<vmem>>, vector<1x1x32xf32>
    tpu.vector_store %arg7[%c0_20, %c0_21, %c0_22], %32 {strides = array<i32>} : memref<1x2x32xf32, #tpu.memory_space<vmem>>, vector<1x1x32xf32>,
    %34 = arith.mulf %29, %29 : vector<48x32xf32>
    %cst_23 = arith.constant dense<0.000000e+00> : vector<32xf32>
    %35 = vector.multi_reduction <add>, %34, %cst_23 [0] : vector<48x32xf32> to vector<32xf32>
    %36 = vector.shape_cast %35 : vector<32xf32> to vector<1x32xf32>
    %37 = vector.shape_cast %36 : vector<1x32xf32> to vector<1x1x32xf32>
    %c0_24 = arith.constant 0 : index
    %c1_25 = arith.constant 1 : index
    %c0_26 = arith.constant 0 : index
    %38 = vector.load %arg7[%c0_24, %c1_25, %c0_26] : memref<1x2x32xf32, #tpu.memory_space<vmem>>, vector<1x1x32xf32>
    tpu.vector_store %arg7[%c0_24, %c1_25, %c0_26], %37 {strides = array<i32>} : memref<1x2x32xf32, #tpu.memory_space<vmem>>, vector<1x1x32xf32>,
    return
  }
  func.func @transform_0(%arg0: i32) -> (i32, i32) {
    %c0_i32 = arith.constant 0 : i32
    %c0_i32_0 = arith.constant 0 : i32
    return %arg0, %c0_i32 : i32, i32
  }
  func.func @transform_1(%arg0: i32) -> (i32, i32) {
    %c0_i32 = arith.constant 0 : i32
    %c0_i32_0 = arith.constant 0 : i32
    %c0_i32_1 = arith.constant 0 : i32
    return %c0_i32, %c0_i32_0 : i32, i32
  }
  func.func @transform_2(%arg0: i32) -> (i32, i32) {
    %c0_i32 = arith.constant 0 : i32
    %c0_i32_0 = arith.constant 0 : i32
    %c0_i32_1 = arith.constant 0 : i32
    return %c0_i32, %c0_i32_0 : i32, i32
  }
  func.func @transform_3(%arg0: i32) -> (i32, i32) {
    %c0_i32 = arith.constant 0 : i32
    %c0_i32_0 = arith.constant 0 : i32
    return %arg0, %c0_i32 : i32, i32
  }
  func.func @transform_4(%arg0: i32) -> (i32, i32, i32) {
    %c0_i32 = arith.constant 0 : i32
    %c0_i32_0 = arith.constant 0 : i32
    %c0_i32_1 = arith.constant 0 : i32
    return %arg0, %c0_i32, %c0_i32_0 : i32, i32, i32
  }
  func.func @transform_5(%arg0: i32) -> (i32, i32) {
    %c0_i32 = arith.constant 0 : i32
    %c0_i32_0 = arith.constant 0 : i32
    return %arg0, %c0_i32 : i32, i32
  }
  func.func @transform_6(%arg0: i32) -> (i32, i32, i32) {
    %c0_i32 = arith.constant 0 : i32
    %c0_i32_0 = arith.constant 0 : i32
    %c0_i32_1 = arith.constant 0 : i32
    return %arg0, %c0_i32, %c0_i32_0 : i32, i32, i32
  }
}

</mosaic_0001>

<llo_original>
// kernel: tpu_custom_call.1
$region0: #{tpu_custom_call.1}
  #allocation0 [shape = 'u32[]', space=smem, size = 0x4, offset = 0x4, fixed_abs, tag = 'smem constant byte address 0x4 - core index']
  #allocation1 [shape = 'u32[72,128]{1,0:T(1,128)}', space=vmem, size = 0x9000, scoped, tag = 'internal scratch']
  %s0 = inlined_call_operand.vmem [shape: f32[128,16], index: 0, kind: input, shape index: {}]
  %s1 = inlined_call_operand.vmem [shape: f32[16,8], index: 1, kind: input, shape index: {}]
  %s2 = inlined_call_operand.vmem [shape: f32[16,32], index: 2, kind: input, shape index: {}]
  %s3 = inlined_call_operand.vmem [shape: f32[128,8], index: 3, kind: output, shape index: {0}]
  %s4 = inlined_call_operand.hbm [shape: f32[3,2,8], index: 4, kind: output, shape index: {1}]
  %s5 = inlined_call_operand.vmem [shape: f32[128,32], index: 5, kind: output, shape index: {2}]
  %s6 = inlined_call_operand.hbm [shape: f32[3,2,32], index: 6, kind: output, shape index: {3}]
  %7 = xla_tuple %s3, %s4, %s5, %s6
  %s8 = sld [smem:[#allocation0]]
  $region165: #{tpu_custom_call.1} parent=0
    _
  %s10 = ssub.s32 1, %s8
  %s11 = scalar_select 0, %s10, %s8
  $region1: #{tpu_custom_call.1} parent=0
    #allocation2 [shape = 'u8[49152]{0}', space=vmem, size = 0xc000, scoped, tag = 'output window, operand 0']
    #allocation3 [shape = 'u8[2048]{0}', space=vmem, size = 0x800, scoped, tag = 'output window, operand 1']
    #allocation4 [shape = 's32[2]{0}', space=sflag, size = 0x8, scoped, tag = 'scoped memory for tpu_custom_call.1']
    #allocation5 [shape = 'u8[49152]{0}', space=vmem, size = 0xc000, scoped, tag = 'output window, operand 2']
    #allocation6 [shape = 'u8[2048]{0}', space=vmem, size = 0x800, scoped, tag = 'output window, operand 3']
    #allocation7 [shape = 's32[2]{0}', space=sflag, size = 0x8, scoped, tag = 'scoped memory for tpu_custom_call.1']
    %12 = vsyncpa [#allocation4], 0
    %s13 = scalar_lea.sflag [#allocation4], 1
    %14 = vsyncpa %s13, 0
    %15 = vsyncpa [#allocation7], 0
    %s16 = scalar_lea.sflag [#allocation7], 1
    %17 = vsyncpa %s16, 0
    loop: start=0, step=1, limit=5
    $region2: #{tpu_custom_call.1} parent=1 // loop_pre_header
      _
    $region3: #{tpu_custom_call.1} parent=1 // loop_header
      %s19 = sphi 0, %s23
      %p20 = scmp.ge.s32.totalorder %s19, 5
      %s29 = sphi 0, %s31
      %s32 = sphi 0, %s29
      %s33 = sphi 0, %s32
      %s49 = sphi 0, %s33
      %s53 = sphi 0, %s53
      %s55 = sphi 0, %s53
      %s56 = sphi 0, %s55
      %s70 = sphi 0, %s56
      %s74 = sphi 0, %s74
      %s76 = sphi 0, %s74
      %s77 = sphi 0, %s76
      %s91 = sphi 0, %s77
      %s97 = sphi 0, %s99
      %s100 = sphi 0, %s97
      %s101 = sphi 0, %s100
      %s117 = sphi 0, %s101
      %s123 = sphi 0, %s125
      %s126 = sphi 0, %s123
      %s127 = sphi 0, %s126
      %s143 = sphi 0, %s127
      %s149 = sphi 0, %s151
      %s152 = sphi 0, %s149
      %s153 = sphi 0, %s152
      %s169 = sphi 0, %s153
      %s175 = sphi 0, %s177
      %s178 = sphi 0, %s175
      %s179 = sphi 0, %s178
      %s195 = sphi 0, %s179
    $region4: #{tpu_custom_call.1} parent=1 // loop_header_branch
      %22 = sbr.rel (%p20) target = $region8
    $region5: #{tpu_custom_call.1} parent=1 // loop_body
      %s24 = ssub.s32 %s19, 1
      %s25 = ssub.s32 %s19, 2
      %s26 = sadd.s32 %s19, 1
      %s27 = ssub.s32 %s19, %s26
      %p28 = scmp.eq.s32.totalorder %s27, 0
      %s30 = sadd.s32 %s29, 1
      %s31 = scalar_select %p28, %s29, %s30
      %p34 = pneg %p28
      %p35 = scmp.eq.s32.totalorder %s19, 2
      %p36 = por %p34, %p35
      %p37 = scmp.ne.s32.totalorder %s29, %s32
      %p38 = scmp.eq.s32.totalorder %s19, 0
      %p39 = por %p37, %p38
      %p40 = scmp.ne.s32.totalorder %s29, %s32
      %p41 = scmp.eq.s32.totalorder %s24, 2
      %p42 = por %p40, %p41
      %p43 = scmp.ne.s32.totalorder %s32, %s33
      %p44 = scmp.eq.s32.totalorder %s24, 0
      %p45 = por %p43, %p44
      %p46 = scmp.ne.s32.totalorder %s32, %s33
      %p47 = scmp.eq.s32.totalorder %s25, 2
      %p48 = por %p46, %p47
      %p50 = scmp.ne.s32.totalorder %s33, %s49
      %p51 = scmp.eq.s32.totalorder %s25, 0
      %p52 = por %p50, %p51
      %s54 = sadd.s32 %s53, 1
      %p57 = scmp.eq.s32.totalorder %s19, 2
      %p58 = scmp.ne.s32.totalorder %s53, %s55
      %p59 = scmp.eq.s32.totalorder %s19, 0
      %p60 = por %p58, %p59
      %p61 = scmp.ne.s32.totalorder %s53, %s55
      %p62 = scmp.eq.s32.totalorder %s24, 2
      %p63 = por %p61, %p62
      %p64 = scmp.ne.s32.totalorder %s55, %s56
      %p65 = scmp.eq.s32.totalorder %s24, 0
      %p66 = por %p64, %p65
      %p67 = scmp.ne.s32.totalorder %s55, %s56
      %p68 = scmp.eq.s32.totalorder %s25, 2
      %p69 = por %p67, %p68
      %p71 = scmp.ne.s32.totalorder %s56, %s70
      %p72 = scmp.eq.s32.totalorder %s25, 0
      %p73 = por %p71, %p72
      %s75 = sadd.s32 %s74, 1
      %p78 = scmp.eq.s32.totalorder %s19, 2
      %p79 = scmp.ne.s32.totalorder %s74, %s76
      %p80 = scmp.eq.s32.totalorder %s19, 0
      %p81 = por %p79, %p80
      %p82 = scmp.ne.s32.totalorder %s74, %s76
      %p83 = scmp.eq.s32.totalorder %s24, 2
      %p84 = por %p82, %p83
      %p85 = scmp.ne.s32.totalorder %s76, %s77
      %p86 = scmp.eq.s32.totalorder %s24, 0
      %p87 = por %p85, %p86
      %p88 = scmp.ne.s32.totalorder %s76, %s77
      %p89 = scmp.eq.s32.totalorder %s25, 2
      %p90 = por %p88, %p89
      %p92 = scmp.ne.s32.totalorder %s77, %s91
      %p93 = scmp.eq.s32.totalorder %s25, 0
      %p94 = por %p92, %p93
      %s95 = ssub.s32 %s19, %s26
      %p96 = scmp.eq.s32.totalorder %s95, 0
      %s98 = sadd.s32 %s97, 1
      %s99 = scalar_select %p96, %s97, %s98
      %p102 = pneg %p96
      %p103 = scmp.eq.s32.totalorder %s19, 2
      %p104 = por %p102, %p103
      %p105 = scmp.ne.s32.totalorder %s97, %s100
      %p106 = scmp.eq.s32.totalorder %s19, 0
      %p107 = por %p105, %p106
      %p108 = scmp.ne.s32.totalorder %s97, %s100
      %p109 = scmp.eq.s32.totalorder %s24, 2
      %p110 = por %p108, %p109
      %p111 = scmp.ne.s32.totalorder %s100, %s101
      %p112 = scmp.eq.s32.totalorder %s24, 0
      %p113 = por %p111, %p112
      %p114 = scmp.ne.s32.totalorder %s100, %s101
      %p115 = scmp.eq.s32.totalorder %s25, 2
      %p116 = por %p114, %p115
      %p118 = scmp.ne.s32.totalorder %s101, %s117
      %p119 = scmp.eq.s32.totalorder %s25, 0
      %p120 = por %p118, %p119
      %s121 = ssub.s32 %s19, %s26
      %p122 = scmp.eq.s32.totalorder %s121, 0
      %s124 = sadd.s32 %s123, 1
      %s125 = scalar_select %p122, %s123, %s124
      %p128 = pneg %p122
      %p129 = scmp.eq.s32.totalorder %s19, 2
      %p130 = por %p128, %p129
      %p131 = scmp.ne.s32.totalorder %s123, %s126
      %p132 = scmp.eq.s32.totalorder %s19, 0
      %p133 = por %p131, %p132
      %p134 = scmp.ne.s32.totalorder %s123, %s126
      %p135 = scmp.eq.s32.totalorder %s24, 2
      %p136 = por %p134, %p135
      %p137 = scmp.ne.s32.totalorder %s126, %s127
      %p138 = scmp.eq.s32.totalorder %s24, 0
      %p139 = por %p137, %p138
      %p140 = scmp.ne.s32.totalorder %s126, %s127
      %p141 = scmp.eq.s32.totalorder %s25, 2
      %p142 = por %p140, %p141
      %p144 = scmp.ne.s32.totalorder %s127, %s143
      %p145 = scmp.eq.s32.totalorder %s25, 0
      %p146 = por %p144, %p145
      %s147 = ssub.s32 %s19, %s26
      %p148 = scmp.eq.s32.totalorder %s147, 0
      %s150 = sadd.s32 %s149, 1
      %s151 = scalar_select %p148, %s149, %s150
      %p154 = pneg %p148
      %p155 = scmp.eq.s32.totalorder %s19, 2
      %p156 = por %p154, %p155
      %p157 = scmp.ne.s32.totalorder %s149, %s152
      %p158 = scmp.eq.s32.totalorder %s19, 0
      %p159 = por %p157, %p158
      %p160 = scmp.ne.s32.totalorder %s149, %s152
      %p161 = scmp.eq.s32.totalorder %s24, 2
      %p162 = por %p160, %p161
      %p163 = scmp.ne.s32.totalorder %s152, %s153
      %p164 = scmp.eq.s32.totalorder %s24, 0
      %p165 = por %p163, %p164
      %p166 = scmp.ne.s32.totalorder %s152, %s153
      %p167 = scmp.eq.s32.totalorder %s25, 2
      %p168 = por %p166, %p167
      %p170 = scmp.ne.s32.totalorder %s153, %s169
      %p171 = scmp.eq.s32.totalorder %s25, 0
      %p172 = por %p170, %p171
      %s173 = ssub.s32 %s19, %s26
      %p174 = scmp.eq.s32.totalorder %s173, 0
      %s176 = sadd.s32 %s175, 1
      %s177 = scalar_select %p174, %s175, %s176
      %p180 = pneg %p174
      %p181 = scmp.eq.s32.totalorder %s19, 2
      %p182 = por %p180, %p181
      %p183 = scmp.ne.s32.totalorder %s175, %s178
      %p184 = scmp.eq.s32.totalorder %s19, 0
      %p185 = por %p183, %p184
      %p186 = scmp.ne.s32.totalorder %s175, %s178
      %p187 = scmp.eq.s32.totalorder %s24, 2
      %p188 = por %p186, %p187
      %p189 = scmp.ne.s32.totalorder %s178, %s179
      %p190 = scmp.eq.s32.totalorder %s24, 0
      %p191 = por %p189, %p190
      %p192 = scmp.ne.s32.totalorder %s178, %s179
      %p193 = scmp.eq.s32.totalorder %s25, 2
      %p194 = por %p192, %p193
      %p196 = scmp.ne.s32.totalorder %s179, %s195
      %p197 = scmp.eq.s32.totalorder %s25, 0
      %p198 = por %p196, %p197
      %p199 = scmp.le.s32.totalorder 1, %s19
      %p200 = scmp.lt.s32.totalorder %s19, 4
      %p201 = pnand %p199, %p200
      %p202 = pneg %p201
      // Predicated region
      $region9: #{tpu_custom_call.1} parent=5 // pred_check
        _
      $region10: #{tpu_custom_call.1} parent=5 // pred_check_branch
        %204 = sbr.rel (%p201) target = $region12
      $region11: #{tpu_custom_call.1} parent=5 // pred_region
        %s205 = ssub.s32 %s19, 1
        // Predicated region
        $region13: #{tpu_custom_call.1} parent=11 // pred_check
          %p206 = pneg %p66
        $region14: #{tpu_custom_call.1} parent=11 // pred_check_branch
          %208 = sbr.rel (%p206) target = $region16
        $region15: #{tpu_custom_call.1} parent=11 // pred_region
          _
        $region16: #{tpu_custom_call.1} parent=11 // pred_fallthru
          _
        // Predicated region
        $region17: #{tpu_custom_call.1} parent=11 // pred_check
          %p209 = pneg %p87
        $region18: #{tpu_custom_call.1} parent=11 // pred_check_branch
          %211 = sbr.rel (%p209) target = $region20
        $region19: #{tpu_custom_call.1} parent=11 // pred_region
          _
        $region20: #{tpu_custom_call.1} parent=11 // pred_fallthru
          _
      $region12: #{tpu_custom_call.1} parent=5 // pred_fallthru
        _
      %p212 = scmp.lt.s32.totalorder %s19, 3
      // Predicated region
      $region21: #{tpu_custom_call.1} parent=5 // pred_check
        %p213 = pneg %p212
      $region22: #{tpu_custom_call.1} parent=5 // pred_check_branch
        %215 = sbr.rel (%p213) target = $region24
      $region23: #{tpu_custom_call.1} parent=5 // pred_region
        // Predicated region
        $region25: #{tpu_custom_call.1} parent=23 // pred_check
          %p216 = pneg %p39
        $region26: #{tpu_custom_call.1} parent=23 // pred_check_branch
          %218 = sbr.rel (%p216) target = $region28
        $region27: #{tpu_custom_call.1} parent=23 // pred_region
          %s219 = smul.u32 6, %s19
          %s220 = ssub.s32 16, %s219
          %p221 = scmp.lt.s32.totalorder %s220, 6
          %s222 = scalar_select %p221, %s220, 6
          %s223 = smul.u32 8, %s222
          %p224 = scmp.lt.s32.totalorder %s219, 15
          %s225 = scalar_select %p224, %s219, 15
          %s226 = smul.addr %s225, 8
          %s227 = scalar_lea.vmem %s0, %s226
          %s228 = smul.u32 6, %s19
          %s229 = ssub.s32 16, %s228
          %p230 = scmp.lt.s32.totalorder %s229, 6
          %s231 = scalar_select %p230, %s229, 6
          %s232 = smul.u32 8, %s231
        $region28: #{tpu_custom_call.1} parent=23 // pred_fallthru
          _
      $region24: #{tpu_custom_call.1} parent=5 // pred_fallthru
        _
      %p233 = scmp.le.s32.totalorder 1, %s19
      %p234 = scmp.lt.s32.totalorder %s19, 4
      %p235 = pnand %p233, %p234
      %p236 = pneg %p235
      // Predicated region
      $region29: #{tpu_custom_call.1} parent=5 // pred_check
        _
      $region30: #{tpu_custom_call.1} parent=5 // pred_check_branch
        %238 = sbr.rel (%p235) target = $region32
      $region31: #{tpu_custom_call.1} parent=5 // pred_region
        %s239 = ssub.s32 %s19, 1
        %s240 = smul.u32 6, %s24
        %s241 = ssub.s32 16, %s240
        %p242 = scmp.lt.s32.totalorder %s241, 6
        %s243 = scalar_select %p242, %s241, 6
        %s244 = smul.u32 8, %s243
        %p245 = scmp.lt.s32.totalorder %s240, 15
        %s246 = scalar_select %p245, %s240, 15
        %s247 = smul.addr %s246, 8
        %s248 = scalar_lea.vmem %s0, %s247
        %p249 = pneg %p45
        %p250 = pneg %p42
        %p251 = pneg %p66
        %p252 = pneg %p63
        %p253 = pneg %p87
        %p254 = pneg %p84
        %p255 = pneg %p113
        %p256 = pneg %p110
        %s257 = sand.u32 %s100, 1
        %s258 = sand.u32 %s100, 1
        %s259 = smul.addr %s258, 48
        %s260 = scalar_lea.vmem [#allocation2], %s259
        %p261 = pneg %p139
        %p262 = pneg %p136
        %s263 = sand.u32 %s126, 1
        %s264 = scalar_lea.sflag [#allocation4], %s263
        %s265 = sand.u32 %s126, 1
        %s266 = smul.addr %s265, 2
        %s267 = scalar_lea.vmem [#allocation3], %s266
        %p268 = pneg %p165
        %p269 = pneg %p162
        %s270 = sand.u32 %s152, 1
        %s271 = sand.u32 %s152, 1
        %s272 = smul.addr %s271, 48
        %s273 = scalar_lea.vmem [#allocation5], %s272
        %p274 = pneg %p191
        %p275 = pneg %p188
        %s276 = sand.u32 %s178, 1
        %s277 = scalar_lea.sflag [#allocation7], %s276
        %s278 = sand.u32 %s178, 1
        %s279 = smul.addr %s278, 2
        %s280 = scalar_lea.vmem [#allocation6], %s279
        %s281 = smul.u32 6, %s24
        %s282 = ssub.s32 16, %s281
        %p283 = scmp.lt.s32.totalorder %s282, 6
        %s284 = scalar_select %p283, %s282, 6
        %s285 = smul.u32 8, %s284
        %p286 = scmp.lt.s32.totalorder %s281, 15
        %s287 = scalar_select %p286, %s281, 15
        %s288 = smul.addr %s287, 8
        %s289 = scalar_lea.vmem %s0, %s288
        %s290 = smul.u32 6, %s24
        %s291 = ssub.s32 16, %s290
        %p292 = scmp.lt.s32.totalorder %s291, 6
        %s293 = scalar_select %p292, %s291, 6
        %s294 = smul.u32 8, %s293
        %s295 = smul.u32 6, %s24
        %s296 = ssub.s32 16, %s295
        %p297 = scmp.lt.s32.totalorder %s296, 6
        %s298 = scalar_select %p297, %s296, 6
        %s299 = smul.u32 8, %s298
        %s300 = smul.u32 6, %s24
        %s301 = ssub.s32 16, %s300
        %p302 = scmp.lt.s32.totalorder %s301, 6
        %s303 = scalar_select %p302, %s301, 6
        %s304 = smul.u32 8, %s303
        %v305 = vlaneseq
        %v306 = vshrl.u32 %v305, 7
        %v307 = vadd.s32 %v306, 8
        %v308 = vadd.s32 %v306, 16
        %v309 = vadd.s32 %v306, 24
        %v310 = vadd.s32 %v306, 32
        %v311 = vadd.s32 %v306, 40
        %s312 = smul.u32 %s24, 48
        %v313 = vstv %s312
        %v314 = vadd.s32 %v306, %v313
        %v315 = vadd.s32 %v307, %v313
        %v316 = vadd.s32 %v308, %v313
        %v317 = vadd.s32 %v309, %v313
        %v318 = vadd.s32 %v310, %v313
        %v319 = vadd.s32 %v311, %v313
        %vm320 = vcmp.lt.s32.totalorder %v314, 128
        %vm321 = vcmp.lt.s32.totalorder %v315, 128
        %vm322 = vcmp.lt.s32.totalorder %v316, 128
        %vm323 = vcmp.lt.s32.totalorder %v317, 128
        %vm324 = vcmp.lt.s32.totalorder %v318, 128
        %vm325 = vcmp.lt.s32.totalorder %v319, 128
        %v326 = vld [vmem:[%s289] sm:$0xff]
        %v327 = vld [vmem:[%s289 + $0x8] sm:$0xff]
        %v328 = vld [vmem:[%s289 + $0x10] sm:$0xff]
        %v329 = vld [vmem:[%s289 + $0x18] sm:$0xff]
        %v330 = vld [vmem:[%s289 + $0x20] sm:$0xff]
        %v331 = vld [vmem:[%s289 + $0x28] sm:$0xff]
        %v332 = vld [vmem:[%s1] sm:$0xff]
        %v333 = vld [vmem:[%s1 + $0x8] sm:$0xff]
        %vm334 = vcmask 130048
        %v336 = vsel %vm334, %v326, 0
        %v339 = vsel %vm334, %v327, 0
        %v342 = vsel %vm334, %v328, 0
        %v345 = vsel %vm334, %v329, 0
        %v348 = vsel %vm334, %v330, 0
        %v351 = vsel %vm334, %v331, 0
        %353 = vmatpush.msra.mxu0 0.0
        %354 = vmatpush.msra.mxu0 0.0
        %355 = vmatpush.msra.mxu0 0.0
        %356 = vmatpush.msra.mxu0 0.0
        %357 = vmatpush.msra.mxu0 0.0
        %358 = vmatpush.msra.mxu0 0.0
        %359 = vmatpush.msra.mxu0 0.0
        %360 = vmatpush.msra.mxu0 0.0
        %361 = vmatpush.msra.mxu0 0.0
        %362 = vmatpush.msra.mxu0 0.0
        %363 = vmatpush.msra.mxu0 0.0
        %364 = vmatpush.msra.mxu0 0.0
        %365 = vmatpush.msra.mxu0 0.0
        %366 = vmatpush.msra.mxu0 0.0
        %367 = vmatpush.msra.mxu0 %v333
        %368 = vmatpush.msra.mxu0 %v332
        %369 = vmatmul.f32.gmra.mxu0 %v336
        %v370 = vpop.f32.mrf.mxu0
        %v371 = vadd.f32 0.0, %v370
        %372 = vmatmul.f32.gmra.mxu0 %v339
        %v373 = vpop.f32.mrf.mxu0
        %v374 = vadd.f32 0.0, %v373
        %375 = vmatmul.f32.gmra.mxu0 %v342
        %v376 = vpop.f32.mrf.mxu0
        %v377 = vadd.f32 0.0, %v376
        %378 = vmatmul.f32.gmra.mxu0 %v345
        %v379 = vpop.f32.mrf.mxu0
        %v380 = vadd.f32 0.0, %v379
        %381 = vmatmul.f32.gmra.mxu0 %v348
        %v382 = vpop.f32.mrf.mxu0
        %v383 = vadd.f32 0.0, %v382
        %384 = vmatmul.f32.gmra.mxu0 %v351
        %v385 = vpop.f32.mrf.mxu0
        %v386 = vadd.f32 0.0, %v385
        %387 = vdwg.mxu0
        %vm388 = vcmask 64512
        %389 = vst.msk [vmem:[%s260] sm:$0xff] %vm388, %v371
        %390 = vst.msk [vmem:[%s260 + $0x8] sm:$0xff] %vm388, %v374
        %391 = vst.msk [vmem:[%s260 + $0x10] sm:$0xff] %vm388, %v377
        %392 = vst.msk [vmem:[%s260 + $0x18] sm:$0xff] %vm388, %v380
        %393 = vst.msk [vmem:[%s260 + $0x20] sm:$0xff] %vm388, %v383
        %394 = vst.msk [vmem:[%s260 + $0x28] sm:$0xff] %vm388, %v386
        %v395 = vsel %vm320, 1, 0
        %v396 = vsel %vm321, 1, 0
        %v397 = vsel %vm322, 1, 0
        %v398 = vsel %vm323, 1, 0
        %v399 = vsel %vm324, 1, 0
        %v400 = vsel %vm325, 1, 0
        %vm401 = vcmp.eq.s32.totalorder %v395, 1
        %vm402 = vcmp.eq.s32.totalorder %v396, 1
        %vm403 = vcmp.eq.s32.totalorder %v397, 1
        %vm404 = vcmp.eq.s32.totalorder %v398, 1
        %vm405 = vcmp.eq.s32.totalorder %v399, 1
        %vm406 = vcmp.eq.s32.totalorder %v400, 1
        %v407 = vsel %vm401, %v371, 0.0
        %v408 = vsel %vm402, %v374, 0.0
        %v409 = vsel %vm403, %v377, 0.0
        %v410 = vsel %vm404, %v380, 0.0
        %v411 = vsel %vm405, %v383, 0.0
        %v412 = vsel %vm406, %v386, 0.0
        %v413 = vsel %vm388, %v407, 0.0
        %v414 = vsel %vm388, %v408, 0.0
        %v415 = vadd.f32 %v413, %v414
        %v416 = vsel %vm388, %v409, 0.0
        %v417 = vadd.f32 %v415, %v416
        %v418 = vsel %vm388, %v410, 0.0
        %v419 = vadd.f32 %v417, %v418
        %v420 = vsel %vm388, %v411, 0.0
        %v421 = vadd.f32 %v419, %v420
        %v422 = vsel %vm388, %v412, 0.0
        %v423 = vadd.f32 %v421, %v422
        %v424 = vrot.slane %v423, 4
        %v425 = vadd.f32 %v423, %v424
        %v426 = vrot.slane %v425, 2
        %v427 = vadd.f32 %v425, %v426
        %v428 = vrot.slane %v427, 1
        %v429 = vadd.f32 %v427, %v428
        %vm430 = vcmask 57344
        %431 = vst.msk [vmem:[%s267] sm:$0x1] %vm430, %v429
        %v432 = vmul.f32 %v407, %v407
        %v433 = vmul.f32 %v408, %v408
        %v434 = vmul.f32 %v409, %v409
        %v435 = vmul.f32 %v410, %v410
        %v436 = vmul.f32 %v411, %v411
        %v437 = vmul.f32 %v412, %v412
        %v438 = vsel %vm388, %v432, 0.0
        %v439 = vsel %vm388, %v433, 0.0
        %v440 = vadd.f32 %v438, %v439
        %v441 = vsel %vm388, %v434, 0.0
        %v442 = vadd.f32 %v440, %v441
        %v443 = vsel %vm388, %v435, 0.0
        %v444 = vadd.f32 %v442, %v443
        %v445 = vsel %vm388, %v436, 0.0
        %v446 = vadd.f32 %v444, %v445
        %v447 = vsel %vm388, %v437, 0.0
        %v448 = vadd.f32 %v446, %v447
        %v449 = vrot.slane %v448, 4
        %v450 = vadd.f32 %v448, %v449
        %v451 = vrot.slane %v450, 2
        %v452 = vadd.f32 %v450, %v451
        %v453 = vrot.slane %v452, 1
        %v454 = vadd.f32 %v452, %v453
        %455 = vst.msk [vmem:[%s267 + $0x1] sm:$0x1] %vm430, %v454
        %v456 = vld [vmem:[%s2] sm:$0xff]
        %v457 = vld [vmem:[%s2 + $0x8] sm:$0xff]
        %458 = vmatpush.msra.mxu0 0.0
        %459 = vmatpush.msra.mxu0 0.0
        %460 = vmatpush.msra.mxu0 0.0
        %461 = vmatpush.msra.mxu0 0.0
        %462 = vmatpush.msra.mxu0 0.0
        %463 = vmatpush.msra.mxu0 0.0
        %464 = vmatpush.msra.mxu0 0.0
        %465 = vmatpush.msra.mxu0 0.0
        %466 = vmatpush.msra.mxu0 0.0
        %467 = vmatpush.msra.mxu0 0.0
        %468 = vmatpush.msra.mxu0 0.0
        %469 = vmatpush.msra.mxu0 0.0
        %470 = vmatpush.msra.mxu0 0.0
        %471 = vmatpush.msra.mxu0 0.0
        %472 = vmatpush.msra.mxu0 %v457
        %473 = vmatpush.msra.mxu0 %v456
        %474 = vmatmul.f32.gmra.mxu0 %v336
        %v475 = vpop.f32.mrf.mxu0
        %v476 = vadd.f32 0.0, %v475
        %477 = vmatmul.f32.gmra.mxu0 %v339
        %v478 = vpop.f32.mrf.mxu0
        %v479 = vadd.f32 0.0, %v478
        %480 = vmatmul.f32.gmra.mxu0 %v342
        %v481 = vpop.f32.mrf.mxu0
        %v482 = vadd.f32 0.0, %v481
        %483 = vmatmul.f32.gmra.mxu0 %v345
        %v484 = vpop.f32.mrf.mxu0
        %v485 = vadd.f32 0.0, %v484
        %486 = vmatmul.f32.gmra.mxu0 %v348
        %v487 = vpop.f32.mrf.mxu0
        %v488 = vadd.f32 0.0, %v487
        %489 = vmatmul.f32.gmra.mxu0 %v351
        %v490 = vpop.f32.mrf.mxu0
        %v491 = vadd.f32 0.0, %v490
        %492 = vdwg.mxu0
        %vm493 = vcmask 261120
        %494 = vst.msk [vmem:[%s273] sm:$0xff] %vm493, %v476
        %495 = vst.msk [vmem:[%s273 + $0x8] sm:$0xff] %vm493, %v479
        %496 = vst.msk [vmem:[%s273 + $0x10] sm:$0xff] %vm493, %v482
        %497 = vst.msk [vmem:[%s273 + $0x18] sm:$0xff] %vm493, %v485
        %498 = vst.msk [vmem:[%s273 + $0x20] sm:$0xff] %vm493, %v488
        %499 = vst.msk [vmem:[%s273 + $0x28] sm:$0xff] %vm493, %v491
        %v500 = vsel %vm401, %v476, 0.0
        %v501 = vsel %vm402, %v479, 0.0
        %v502 = vsel %vm403, %v482, 0.0
        %v503 = vsel %vm404, %v485, 0.0
        %v504 = vsel %vm405, %v488, 0.0
        %v505 = vsel %vm406, %v491, 0.0
        %v506 = vsel %vm493, %v500, 0.0
        %v507 = vsel %vm493, %v501, 0.0
        %v508 = vadd.f32 %v506, %v507
        %v509 = vsel %vm493, %v502, 0.0
        %v510 = vadd.f32 %v508, %v509
        %v511 = vsel %vm493, %v503, 0.0
        %v512 = vadd.f32 %v510, %v511
        %v513 = vsel %vm493, %v504, 0.0
        %v514 = vadd.f32 %v512, %v513
        %v515 = vsel %vm493, %v505, 0.0
        %v516 = vadd.f32 %v514, %v515
        %v517 = vrot.slane %v516, 4
        %v518 = vadd.f32 %v516, %v517
        %v519 = vrot.slane %v518, 2
        %v520 = vadd.f32 %v518, %v519
        %v521 = vrot.slane %v520, 1
        %v522 = vadd.f32 %v520, %v521
        %vm523 = vcmask 253952
        %524 = vst.msk [vmem:[%s280] sm:$0x1] %vm523, %v522
        %v525 = vmul.f32 %v500, %v500
        %v526 = vmul.f32 %v501, %v501
        %v527 = vmul.f32 %v502, %v502
        %v528 = vmul.f32 %v503, %v503
        %v529 = vmul.f32 %v504, %v504
        %v530 = vmul.f32 %v505, %v505
        %v531 = vsel %vm493, %v525, 0.0
        %v532 = vsel %vm493, %v526, 0.0
        %v533 = vadd.f32 %v531, %v532
        %v534 = vsel %vm493, %v527, 0.0
        %v535 = vadd.f32 %v533, %v534
        %v536 = vsel %vm493, %v528, 0.0
        %v537 = vadd.f32 %v535, %v536
        %v538 = vsel %vm493, %v529, 0.0
        %v539 = vadd.f32 %v537, %v538
        %v540 = vsel %vm493, %v530, 0.0
        %v541 = vadd.f32 %v539, %v540
        %v542 = vrot.slane %v541, 4
        %v543 = vadd.f32 %v541, %v542
        %v544 = vrot.slane %v543, 2
        %v545 = vadd.f32 %v543, %v544
        %v546 = vrot.slane %v545, 1
        %v547 = vadd.f32 %v545, %v546
        %548 = vst.msk [vmem:[%s280 + $0x1] sm:$0x1] %vm523, %v547
        %s549 = sand.u32 %s100, 1
        %s550 = sand.u32 %s100, 1
        %s551 = smul.addr %s550, 48
        %s552 = scalar_lea.vmem [#allocation2], %s551
        %s553 = sand.u32 %s126, 1
        %s554 = scalar_lea.sflag [#allocation4], %s553
        %s555 = sand.u32 %s126, 1
        %s556 = smul.addr %s555, 2
        %s557 = scalar_lea.vmem [#allocation3], %s556
        %s558 = sand.u32 %s152, 1
        %s559 = sand.u32 %s152, 1
        %s560 = smul.addr %s559, 48
        %s561 = scalar_lea.vmem [#allocation5], %s560
        %s562 = sand.u32 %s178, 1
        %s563 = scalar_lea.sflag [#allocation7], %s562
        %s564 = sand.u32 %s178, 1
        %s565 = smul.addr %s564, 2
        %s566 = scalar_lea.vmem [#allocation6], %s565
        // Predicated region
        $region33: #{tpu_custom_call.1} parent=31 // pred_check
          %p567 = pneg %p110
        $region34: #{tpu_custom_call.1} parent=31 // pred_check_branch
          %569 = sbr.rel (%p567) target = $region36
        $region35: #{tpu_custom_call.1} parent=31 // pred_region
          %s570 = smul.u32 6, %s24
          %s571 = ssub.s32 16, %s570
          %p572 = scmp.lt.s32.totalorder %s571, 6
          %s573 = scalar_select %p572, %s571, 6
          %s574 = smul.u32 8, %s573
          %p575 = scmp.ne.s32.totalorder 0, %s574
          %s576 = smul.addr %s570, 8
          %s577 = scalar_lea.vmem %s3, %s576
          // Predicated region
          $region37: #{tpu_custom_call.1} parent=35 // pred_check
            %p578 = pneg %p575
          $region38: #{tpu_custom_call.1} parent=35 // pred_check_branch
            %580 = sbr.rel (%p578) target = $region40
          $region39: #{tpu_custom_call.1} parent=35 // pred_region
            // Predicated region
            $region41: #{tpu_custom_call.1} parent=39 // pred_check
              _
            $region42: #{tpu_custom_call.1} parent=39 // pred_check_branch
              %582 = sbr.rel (0) target = $region44
            $region43: #{tpu_custom_call.1} parent=39 // pred_region
              // Predicated region
              $region63: #{tpu_custom_call.1} parent=43 // pred_check
                _
              $region64: #{tpu_custom_call.1} parent=43 // pred_check_branch
                %643 = sbr.rel (0) target = $region66
              $region65: #{tpu_custom_call.1} parent=43 // pred_region
                %s644 = sdiv.u32.pop %s573, 6
                %s645 = srem.u32.pop %s573, 6
                // While loop
                $region67: #{tpu_custom_call.1} parent=65 // loop_pre_header
                  _
                $region68: #{tpu_custom_call.1} parent=65 // loop_header
                  %s647 = sphi 0, %s649
                  %p648 = scmp.ge.s32.totalorder %s647, %s644
                  %s652 = sphi 0, %s669
                  %s653 = sphi %s552, %s672
                  %s654 = sphi %s577, %s673
                $region69: #{tpu_custom_call.1} parent=65 // loop_header_branch
                  %651 = sbr.rel (%p648) target = $region73
                $region70: #{tpu_custom_call.1} parent=65 // loop_body
                  %v655 = vld [vmem:[%s653] sm:$0xff]
                  %656 = vst [vmem:[%s654] sm:$0xff] %v655
                  %v657 = vld [vmem:[%s653 + $0x8] sm:$0xff]
                  %658 = vst [vmem:[%s654 + $0x8] sm:$0xff] %v657
                  %v659 = vld [vmem:[%s653 + $0x10] sm:$0xff]
                  %660 = vst [vmem:[%s654 + $0x10] sm:$0xff] %v659
                  %v661 = vld [vmem:[%s653 + $0x18] sm:$0xff]
                  %662 = vst [vmem:[%s654 + $0x18] sm:$0xff] %v661
                  %v663 = vld [vmem:[%s653 + $0x20] sm:$0xff]
                  %664 = vst [vmem:[%s654 + $0x20] sm:$0xff] %v663
                  %v665 = vld [vmem:[%s653 + $0x28] sm:$0xff]
                  %666 = vst [vmem:[%s654 + $0x28] sm:$0xff] %v665
                  %s667 = sadd.s32 1, %s652
                  %p668 = scmp.ge.s32.totalorder %s667, %s644
                  %s669 = scalar_select %p668, 0, %s667
                  %s670 = smul.u32 %s669, 48
                  %s671 = smul.u32 %s669, 48
                  %s672 = scalar_lea.vmem %s552, %s670 [#allocation2]
                  %s673 = scalar_lea.vmem %s577, %s671
                $region71: #{tpu_custom_call.1} parent=65 // loop_footer
                  %s649 = sadd.s32 %s647, 1
                $region72: #{tpu_custom_call.1} parent=65 // loop_footer_branch
                  %646 = sbr.rel target = $region68
                $region73: #{tpu_custom_call.1} parent=65 // loop_exit
                  _
                %s674 = sdiv.u32.pop %s573, 6
                %s675 = srem.u32.pop %s573, 6
                %s676 = smul.u32 %s674, 6
                %s677 = smul.u32 8, %s676
                %s678 = scalar_lea.vmem %s552, %s677 [#allocation2]
                %s679 = smul.u32 8, %s676
                %s680 = scalar_lea.vmem %s577, %s679
                // While loop
                $region74: #{tpu_custom_call.1} parent=65 // loop_pre_header
                  _
                $region75: #{tpu_custom_call.1} parent=65 // loop_header
                  %s682 = sphi 0, %s684
                  %p683 = scmp.ge.s32.totalorder %s682, %s675
                  %s687 = sphi 0, %s694
                  %s688 = sphi %s678, %s697
                  %s689 = sphi %s680, %s698
                $region76: #{tpu_custom_call.1} parent=65 // loop_header_branch
                  %686 = sbr.rel (%p683) target = $region80
                $region77: #{tpu_custom_call.1} parent=65 // loop_body
                  %v690 = vld [vmem:[%s688] sm:$0xff]
                  %691 = vst [vmem:[%s689] sm:$0xff] %v690
                  %s692 = sadd.s32 1, %s687
                  %p693 = scmp.ge.s32.totalorder %s692, %s675
                  %s694 = scalar_select %p693, 0, %s692
                  %s695 = smul.u32 %s694, 8
                  %s696 = smul.u32 %s694, 8
                  %s697 = scalar_lea.vmem %s678, %s695 [#allocation2]
                  %s698 = scalar_lea.vmem %s680, %s696
                $region78: #{tpu_custom_call.1} parent=65 // loop_footer
                  %s684 = sadd.s32 %s682, 1
                $region79: #{tpu_custom_call.1} parent=65 // loop_footer_branch
                  %681 = sbr.rel target = $region75
                $region80: #{tpu_custom_call.1} parent=65 // loop_exit
                  _
              $region66: #{tpu_custom_call.1} parent=43 // pred_fallthru
                _
              // Predicated region
              $region81: #{tpu_custom_call.1} parent=43 // pred_check
                _
              $region82: #{tpu_custom_call.1} parent=43 // pred_check_branch
                %700 = sbr.rel target = $region84
              $region83: #{tpu_custom_call.1} parent=43 // pred_region
                _
              $region84: #{tpu_custom_call.1} parent=43 // pred_fallthru
                _
            $region44: #{tpu_custom_call.1} parent=39 // pred_fallthru
              _
            // Predicated region
            $region45: #{tpu_custom_call.1} parent=39 // pred_check
              _
            $region46: #{tpu_custom_call.1} parent=39 // pred_check_branch
              %584 = sbr.rel target = $region48
            $region47: #{tpu_custom_call.1} parent=39 // pred_region
              %s586 = ssub.s32 256, 1
              %s587 = sdiv.u32.pop %s573, 6
              %s588 = srem.u32.pop %s573, 6
              // While loop
              $region49: #{tpu_custom_call.1} parent=47 // loop_pre_header
                _
              $region50: #{tpu_custom_call.1} parent=47 // loop_header
                %s590 = sphi 0, %s592
                %p591 = scmp.ge.s32.totalorder %s590, %s587
                %s595 = sphi 0, %s612
                %s596 = sphi %s552, %s615
                %s597 = sphi %s577, %s616
              $region51: #{tpu_custom_call.1} parent=47 // loop_header_branch
                %594 = sbr.rel (%p591) target = $region55
              $region52: #{tpu_custom_call.1} parent=47 // loop_body
                %v598 = vld [vmem:[%s596] sm:%s586]
                %599 = vst [vmem:[%s597] sm:%s586] %v598
                %v600 = vld [vmem:[%s596 + $0x8] sm:%s586]
                %601 = vst [vmem:[%s597 + $0x8] sm:%s586] %v600
                %v602 = vld [vmem:[%s596 + $0x10] sm:%s586]
                %603 = vst [vmem:[%s597 + $0x10] sm:%s586] %v602
                %v604 = vld [vmem:[%s596 + $0x18] sm:%s586]
                %605 = vst [vmem:[%s597 + $0x18] sm:%s586] %v604
                %v606 = vld [vmem:[%s596 + $0x20] sm:%s586]
                %607 = vst [vmem:[%s597 + $0x20] sm:%s586] %v606
                %v608 = vld [vmem:[%s596 + $0x28] sm:%s586]
                %609 = vst [vmem:[%s597 + $0x28] sm:%s586] %v608
                %s610 = sadd.s32 1, %s595
                %p611 = scmp.ge.s32.totalorder %s610, %s587
                %s612 = scalar_select %p611, 0, %s610
                %s613 = smul.u32 %s612, 48
                %s614 = smul.u32 %s612, 48
                %s615 = scalar_lea.vmem %s552, %s613 [#allocation2]
                %s616 = scalar_lea.vmem %s577, %s614
              $region53: #{tpu_custom_call.1} parent=47 // loop_footer
                %s592 = sadd.s32 %s590, 1
              $region54: #{tpu_custom_call.1} parent=47 // loop_footer_branch
                %589 = sbr.rel target = $region50
              $region55: #{tpu_custom_call.1} parent=47 // loop_exit
                _
              %s617 = sdiv.u32.pop %s573, 6
              %s618 = srem.u32.pop %s573, 6
              %s619 = smul.u32 %s617, 6
              %s620 = smul.u32 8, %s619
              %s621 = scalar_lea.vmem %s552, %s620 [#allocation2]
              %s622 = smul.u32 8, %s619
              %s623 = scalar_lea.vmem %s577, %s622
              // While loop
              $region56: #{tpu_custom_call.1} parent=47 // loop_pre_header
                _
              $region57: #{tpu_custom_call.1} parent=47 // loop_header
                %s625 = sphi 0, %s627
                %p626 = scmp.ge.s32.totalorder %s625, %s618
                %s630 = sphi 0, %s637
                %s631 = sphi %s621, %s640
                %s632 = sphi %s623, %s641
              $region58: #{tpu_custom_call.1} parent=47 // loop_header_branch
                %629 = sbr.rel (%p626) target = $region62
              $region59: #{tpu_custom_call.1} parent=47 // loop_body
                %v633 = vld [vmem:[%s631] sm:%s586]
                %634 = vst [vmem:[%s632] sm:%s586] %v633
                %s635 = sadd.s32 1, %s630
                %p636 = scmp.ge.s32.totalorder %s635, %s618
                %s637 = scalar_select %p636, 0, %s635
                %s638 = smul.u32 %s637, 8
                %s639 = smul.u32 %s637, 8
                %s640 = scalar_lea.vmem %s621, %s638 [#allocation2]
                %s641 = scalar_lea.vmem %s623, %s639
              $region60: #{tpu_custom_call.1} parent=47 // loop_footer
                %s627 = sadd.s32 %s625, 1
              $region61: #{tpu_custom_call.1} parent=47 // loop_footer_branch
                %624 = sbr.rel target = $region57
              $region62: #{tpu_custom_call.1} parent=47 // loop_exit
                _
            $region48: #{tpu_custom_call.1} parent=39 // pred_fallthru
              _
          $region40: #{tpu_custom_call.1} parent=35 // pred_fallthru
            _
          %701 = vnop
        $region36: #{tpu_custom_call.1} parent=31 // pred_fallthru
          _
        // Predicated region
        $region85: #{tpu_custom_call.1} parent=31 // pred_check
          %p702 = pneg %p136
        $region86: #{tpu_custom_call.1} parent=31 // pred_check_branch
          %704 = sbr.rel (%p702) target = $region88
        $region87: #{tpu_custom_call.1} parent=31 // pred_region
          %706 = vsyncadd %s554, 0
          %s707 = smul.addr %s24, 2
          %s708 = scalar_lea.hbm %s4, %s707
          %s710 = sshll.u32 %s557, 4
          %s711 = int_to_ptr.vmem [resolvable:$true] %s710
          %s712 = sshll.u32 %s708, 4
          %s713 = int_to_ptr.hbm [resolvable:$true] %s712
          %715 = dma.vmem_to_hbm [thread:$0]  %s711, 32, %s713, %s554
        $region88: #{tpu_custom_call.1} parent=31 // pred_fallthru
          _
        // Predicated region
        $region89: #{tpu_custom_call.1} parent=31 // pred_check
          %p716 = pneg %p162
        $region90: #{tpu_custom_call.1} parent=31 // pred_check_branch
          %718 = sbr.rel (%p716) target = $region92
        $region91: #{tpu_custom_call.1} parent=31 // pred_region
          %s719 = smul.u32 6, %s24
          %s720 = ssub.s32 16, %s719
          %p721 = scmp.lt.s32.totalorder %s720, 6
          %s722 = scalar_select %p721, %s720, 6
          %s723 = smul.u32 8, %s722
          %p724 = scmp.ne.s32.totalorder 0, %s723
          %s725 = smul.addr %s719, 8
          %s726 = scalar_lea.vmem %s5, %s725
          // Predicated region
          $region93: #{tpu_custom_call.1} parent=91 // pred_check
            %p727 = pneg %p724
          $region94: #{tpu_custom_call.1} parent=91 // pred_check_branch
            %729 = sbr.rel (%p727) target = $region96
          $region95: #{tpu_custom_call.1} parent=91 // pred_region
            // Predicated region
            $region97: #{tpu_custom_call.1} parent=95 // pred_check
              _
            $region98: #{tpu_custom_call.1} parent=95 // pred_check_branch
              %731 = sbr.rel (0) target = $region100
            $region99: #{tpu_custom_call.1} parent=95 // pred_region
              // Predicated region
              $region119: #{tpu_custom_call.1} parent=99 // pred_check
                _
              $region120: #{tpu_custom_call.1} parent=99 // pred_check_branch
                %792 = sbr.rel (0) target = $region122
              $region121: #{tpu_custom_call.1} parent=99 // pred_region
                %s793 = sdiv.u32.pop %s722, 6
                %s794 = srem.u32.pop %s722, 6
                // While loop
                $region123: #{tpu_custom_call.1} parent=121 // loop_pre_header
                  _
                $region124: #{tpu_custom_call.1} parent=121 // loop_header
                  %s796 = sphi 0, %s798
                  %p797 = scmp.ge.s32.totalorder %s796, %s793
                  %s801 = sphi 0, %s818
                  %s802 = sphi %s561, %s821
                  %s803 = sphi %s726, %s822
                $region125: #{tpu_custom_call.1} parent=121 // loop_header_branch
                  %800 = sbr.rel (%p797) target = $region129
                $region126: #{tpu_custom_call.1} parent=121 // loop_body
                  %v804 = vld [vmem:[%s802] sm:$0xff]
                  %805 = vst [vmem:[%s803] sm:$0xff] %v804
                  %v806 = vld [vmem:[%s802 + $0x8] sm:$0xff]
                  %807 = vst [vmem:[%s803 + $0x8] sm:$0xff] %v806
                  %v808 = vld [vmem:[%s802 + $0x10] sm:$0xff]
                  %809 = vst [vmem:[%s803 + $0x10] sm:$0xff] %v808
                  %v810 = vld [vmem:[%s802 + $0x18] sm:$0xff]
                  %811 = vst [vmem:[%s803 + $0x18] sm:$0xff] %v810
                  %v812 = vld [vmem:[%s802 + $0x20] sm:$0xff]
                  %813 = vst [vmem:[%s803 + $0x20] sm:$0xff] %v812
                  %v814 = vld [vmem:[%s802 + $0x28] sm:$0xff]
                  %815 = vst [vmem:[%s803 + $0x28] sm:$0xff] %v814
                  %s816 = sadd.s32 1, %s801
                  %p817 = scmp.ge.s32.totalorder %s816, %s793
                  %s818 = scalar_select %p817, 0, %s816
                  %s819 = smul.u32 %s818, 48
                  %s820 = smul.u32 %s818, 48
                  %s821 = scalar_lea.vmem %s561, %s819 [#allocation5]
                  %s822 = scalar_lea.vmem %s726, %s820
                $region127: #{tpu_custom_call.1} parent=121 // loop_footer
                  %s798 = sadd.s32 %s796, 1
                $region128: #{tpu_custom_call.1} parent=121 // loop_footer_branch
                  %795 = sbr.rel target = $region124
                $region129: #{tpu_custom_call.1} parent=121 // loop_exit
                  _
                %s823 = sdiv.u32.pop %s722, 6
                %s824 = srem.u32.pop %s722, 6
                %s825 = smul.u32 %s823, 6
                %s826 = smul.u32 8, %s825
                %s827 = scalar_lea.vmem %s561, %s826 [#allocation5]
                %s828 = smul.u32 8, %s825
                %s829 = scalar_lea.vmem %s726, %s828
                // While loop
                $region130: #{tpu_custom_call.1} parent=121 // loop_pre_header
                  _
                $region131: #{tpu_custom_call.1} parent=121 // loop_header
                  %s831 = sphi 0, %s833
                  %p832 = scmp.ge.s32.totalorder %s831, %s824
                  %s836 = sphi 0, %s843
                  %s837 = sphi %s827, %s846
                  %s838 = sphi %s829, %s847
                $region132: #{tpu_custom_call.1} parent=121 // loop_header_branch
                  %835 = sbr.rel (%p832) target = $region136
                $region133: #{tpu_custom_call.1} parent=121 // loop_body
                  %v839 = vld [vmem:[%s837] sm:$0xff]
                  %840 = vst [vmem:[%s838] sm:$0xff] %v839
                  %s841 = sadd.s32 1, %s836
                  %p842 = scmp.ge.s32.totalorder %s841, %s824
                  %s843 = scalar_select %p842, 0, %s841
                  %s844 = smul.u32 %s843, 8
                  %s845 = smul.u32 %s843, 8
                  %s846 = scalar_lea.vmem %s827, %s844 [#allocation5]
                  %s847 = scalar_lea.vmem %s829, %s845
                $region134: #{tpu_custom_call.1} parent=121 // loop_footer
                  %s833 = sadd.s32 %s831, 1
                $region135: #{tpu_custom_call.1} parent=121 // loop_footer_branch
                  %830 = sbr.rel target = $region131
                $region136: #{tpu_custom_call.1} parent=121 // loop_exit
                  _
              $region122: #{tpu_custom_call.1} parent=99 // pred_fallthru
                _
              // Predicated region
              $region137: #{tpu_custom_call.1} parent=99 // pred_check
                _
              $region138: #{tpu_custom_call.1} parent=99 // pred_check_branch
                %849 = sbr.rel target = $region140
              $region139: #{tpu_custom_call.1} parent=99 // pred_region
                _
              $region140: #{tpu_custom_call.1} parent=99 // pred_fallthru
                _
            $region100: #{tpu_custom_call.1} parent=95 // pred_fallthru
              _
            // Predicated region
            $region101: #{tpu_custom_call.1} parent=95 // pred_check
              _
            $region102: #{tpu_custom_call.1} parent=95 // pred_check_branch
              %733 = sbr.rel target = $region104
            $region103: #{tpu_custom_call.1} parent=95 // pred_region
              %s735 = ssub.s32 256, 1
              %s736 = sdiv.u32.pop %s722, 6
              %s737 = srem.u32.pop %s722, 6
              // While loop
              $region105: #{tpu_custom_call.1} parent=103 // loop_pre_header
                _
              $region106: #{tpu_custom_call.1} parent=103 // loop_header
                %s739 = sphi 0, %s741
                %p740 = scmp.ge.s32.totalorder %s739, %s736
                %s744 = sphi 0, %s761
                %s745 = sphi %s561, %s764
                %s746 = sphi %s726, %s765
              $region107: #{tpu_custom_call.1} parent=103 // loop_header_branch
                %743 = sbr.rel (%p740) target = $region111
              $region108: #{tpu_custom_call.1} parent=103 // loop_body
                %v747 = vld [vmem:[%s745] sm:%s735]
                %748 = vst [vmem:[%s746] sm:%s735] %v747
                %v749 = vld [vmem:[%s745 + $0x8] sm:%s735]
                %750 = vst [vmem:[%s746 + $0x8] sm:%s735] %v749
                %v751 = vld [vmem:[%s745 + $0x10] sm:%s735]
                %752 = vst [vmem:[%s746 + $0x10] sm:%s735] %v751
                %v753 = vld [vmem:[%s745 + $0x18] sm:%s735]
                %754 = vst [vmem:[%s746 + $0x18] sm:%s735] %v753
                %v755 = vld [vmem:[%s745 + $0x20] sm:%s735]
                %756 = vst [vmem:[%s746 + $0x20] sm:%s735] %v755
                %v757 = vld [vmem:[%s745 + $0x28] sm:%s735]
                %758 = vst [vmem:[%s746 + $0x28] sm:%s735] %v757
                %s759 = sadd.s32 1, %s744
                %p760 = scmp.ge.s32.totalorder %s759, %s736
                %s761 = scalar_select %p760, 0, %s759
                %s762 = smul.u32 %s761, 48
                %s763 = smul.u32 %s761, 48
                %s764 = scalar_lea.vmem %s561, %s762 [#allocation5]
                %s765 = scalar_lea.vmem %s726, %s763
              $region109: #{tpu_custom_call.1} parent=103 // loop_footer
                %s741 = sadd.s32 %s739, 1
              $region110: #{tpu_custom_call.1} parent=103 // loop_footer_branch
                %738 = sbr.rel target = $region106
              $region111: #{tpu_custom_call.1} parent=103 // loop_exit
                _
              %s766 = sdiv.u32.pop %s722, 6
              %s767 = srem.u32.pop %s722, 6
              %s768 = smul.u32 %s766, 6
              %s769 = smul.u32 8, %s768
              %s770 = scalar_lea.vmem %s561, %s769 [#allocation5]
              %s771 = smul.u32 8, %s768
              %s772 = scalar_lea.vmem %s726, %s771
              // While loop
              $region112: #{tpu_custom_call.1} parent=103 // loop_pre_header
                _
              $region113: #{tpu_custom_call.1} parent=103 // loop_header
                %s774 = sphi 0, %s776
                %p775 = scmp.ge.s32.totalorder %s774, %s767
                %s779 = sphi 0, %s786
                %s780 = sphi %s770, %s789
                %s781 = sphi %s772, %s790
              $region114: #{tpu_custom_call.1} parent=103 // loop_header_branch
                %778 = sbr.rel (%p775) target = $region118
              $region115: #{tpu_custom_call.1} parent=103 // loop_body
                %v782 = vld [vmem:[%s780] sm:%s735]
                %783 = vst [vmem:[%s781] sm:%s735] %v782
                %s784 = sadd.s32 1, %s779
                %p785 = scmp.ge.s32.totalorder %s784, %s767
                %s786 = scalar_select %p785, 0, %s784
                %s787 = smul.u32 %s786, 8
                %s788 = smul.u32 %s786, 8
                %s789 = scalar_lea.vmem %s770, %s787 [#allocation5]
                %s790 = scalar_lea.vmem %s772, %s788
              $region116: #{tpu_custom_call.1} parent=103 // loop_footer
                %s776 = sadd.s32 %s774, 1
              $region117: #{tpu_custom_call.1} parent=103 // loop_footer_branch
                %773 = sbr.rel target = $region113
              $region118: #{tpu_custom_call.1} parent=103 // loop_exit
                _
            $region104: #{tpu_custom_call.1} parent=95 // pred_fallthru
              _
          $region96: #{tpu_custom_call.1} parent=91 // pred_fallthru
            _
          %850 = vnop
        $region92: #{tpu_custom_call.1} parent=31 // pred_fallthru
          _
        // Predicated region
        $region141: #{tpu_custom_call.1} parent=31 // pred_check
          %p851 = pneg %p188
        $region142: #{tpu_custom_call.1} parent=31 // pred_check_branch
          %853 = sbr.rel (%p851) target = $region144
        $region143: #{tpu_custom_call.1} parent=31 // pred_region
          %855 = vsyncadd %s563, 0
          %s856 = smul.addr %s24, 2
          %s857 = scalar_lea.hbm %s6, %s856
          %s859 = sshll.u32 %s566, 4
          %s860 = int_to_ptr.vmem [resolvable:$true] %s859
          %s861 = sshll.u32 %s857, 4
          %s862 = int_to_ptr.hbm [resolvable:$true] %s861
          %864 = dma.vmem_to_hbm [thread:$0]  %s860, 32, %s862, %s563
        $region144: #{tpu_custom_call.1} parent=31 // pred_fallthru
          _
      $region32: #{tpu_custom_call.1} parent=5 // pred_fallthru
        _
      %p865 = scmp.le.s32.totalorder 2, %s19
      // Predicated region
      $region145: #{tpu_custom_call.1} parent=5 // pred_check
        %p866 = pneg %p865
      $region146: #{tpu_custom_call.1} parent=5 // pred_check_branch
        %868 = sbr.rel (%p866) target = $region148
      $region147: #{tpu_custom_call.1} parent=5 // pred_region
        %s869 = ssub.s32 %s19, 2
        // Predicated region
        $region149: #{tpu_custom_call.1} parent=147 // pred_check
          %p870 = pneg %p116
        $region150: #{tpu_custom_call.1} parent=147 // pred_check_branch
          %872 = sbr.rel (%p870) target = $region152
        $region151: #{tpu_custom_call.1} parent=147 // pred_region
          %s873 = sand.u32 %s101, 1
          %s874 = sand.u32 %s101, 1
          %s875 = smul.addr %s874, 48
          %s876 = scalar_lea.vmem [#allocation2], %s875
        $region152: #{tpu_custom_call.1} parent=147 // pred_fallthru
          _
        // Predicated region
        $region153: #{tpu_custom_call.1} parent=147 // pred_check
          %p877 = pneg %p142
        $region154: #{tpu_custom_call.1} parent=147 // pred_check_branch
          %879 = sbr.rel (%p877) target = $region156
        $region155: #{tpu_custom_call.1} parent=147 // pred_region
          %s880 = sand.u32 %s127, 1
          %s881 = scalar_lea.sflag [#allocation4], %s880
          %s882 = sand.u32 %s127, 1
          %s883 = smul.addr %s882, 2
          %s884 = scalar_lea.vmem [#allocation3], %s883
          %886 = dma.done %s881, 32
        $region156: #{tpu_custom_call.1} parent=147 // pred_fallthru
          _
        // Predicated region
        $region157: #{tpu_custom_call.1} parent=147 // pred_check
          %p887 = pneg %p168
        $region158: #{tpu_custom_call.1} parent=147 // pred_check_branch
          %889 = sbr.rel (%p887) target = $region160
        $region159: #{tpu_custom_call.1} parent=147 // pred_region
          %s890 = sand.u32 %s153, 1
          %s891 = sand.u32 %s153, 1
          %s892 = smul.addr %s891, 48
          %s893 = scalar_lea.vmem [#allocation5], %s892
        $region160: #{tpu_custom_call.1} parent=147 // pred_fallthru
          _
        // Predicated region
        $region161: #{tpu_custom_call.1} parent=147 // pred_check
          %p894 = pneg %p194
        $region162: #{tpu_custom_call.1} parent=147 // pred_check_branch
          %896 = sbr.rel (%p894) target = $region164
        $region163: #{tpu_custom_call.1} parent=147 // pred_region
          %s897 = sand.u32 %s179, 1
          %s898 = scalar_lea.sflag [#allocation7], %s897
          %s899 = sand.u32 %s179, 1
          %s900 = smul.addr %s899, 2
          %s901 = scalar_lea.vmem [#allocation6], %s900
          %903 = dma.done %s898, 32
        $region164: #{tpu_custom_call.1} parent=147 // pred_fallthru
          _
      $region148: #{tpu_custom_call.1} parent=5 // pred_fallthru
        _
    $region6: #{tpu_custom_call.1} parent=1 // loop_footer
      %s23 = sadd.s32 1, %s19
    $region7: #{tpu_custom_call.1} parent=1 // loop_footer_branch
      %18 = sbr.rel target = $region3
    $region8: #{tpu_custom_call.1} parent=1 // loop_exit
      _
    %904 = vsyncpa [#allocation4], 1
    %s905 = scalar_lea.sflag [#allocation4], 1
    %906 = vsyncpa %s905, 1
    %907 = vsyncpa [#allocation7], 1
    %s908 = scalar_lea.sflag [#allocation7], 1
    %909 = vsyncpa %s908, 1

</llo_original>
